<compile_context>
chip_gen: v5e
topology: v5e:2x2
jax: 0.10.0
libtpu: 0.0.40
codegen_flags: <defaults>
</compile_context>

<pallas_src>
import jax
import jax.numpy as jnp
from jax.experimental import pallas as pl
from jax.experimental.pallas import tpu as pltpu


def lstm_last_kernel(x_ref, wih_ref, whh_ref, b_ref, out_ref,
                     gx_scr, h_scr, c_scr):
    # x_ref  : (Ts*Bp, E)  time-major tile of embedded tokens (compute dtype)
    # wih_ref: (E, 4H)     input->hidden weights, transposed, gates [i|f|o|g]
    # whh_ref: (H, 4H)     hidden->hidden weights, transposed, gates [i|f|o|g]
    # b_ref  : (1, 4H)     combined bias  b_ih + b_hh  (f32, reordered)
    # out_ref: (Bp, H)     last-step hidden state (written at last grid step)
    # gx_scr : (Ts*Bp, 4H) f32 scratch for the hoisted input projection
    # h_scr/c_scr: (Bp, H) f32 recurrent state carried across grid steps
    Bp, H = h_scr.shape
    Ts = x_ref.shape[0] // Bp

    @pl.when(pl.program_id(0) == 0)
    def _init():
        h_scr[...] = jnp.zeros_like(h_scr)
        c_scr[...] = jnp.zeros_like(c_scr)

    # Hoisted input projection + bias: one big-M MXU matmul covering all Ts
    # steps; park the result in VMEM so the per-step loop only keeps a single
    # (Bp, 4H) slab live in vregs (no spill storm at large time tiles).
    gx_scr[...] = (
        jnp.dot(x_ref[...], wih_ref[...], preferred_element_type=jnp.float32)
        + b_ref[...]
    )

    whh = whh_ref[...]          # (H, 4H), compute dtype (bf16 by default)
    cdt = whh.dtype

    def step(t, carry):
        h, c = carry
        row = pl.multiple_of(t * Bp, Bp)
        gates = gx_scr[pl.ds(row, Bp), :] + jnp.dot(
            h.astype(cdt), whh, preferred_element_type=jnp.float32)  # (Bp, 4H)
        # Gate layout (wrapper-reordered): [ i | f | o | g ]
        sg = jax.nn.sigmoid(gates[:, : 3 * H])   # one 3H-wide EUP pass
        g_g = jnp.tanh(gates[:, 3 * H:])         # one  H-wide EUP pass
        i_g = sg[:, 0 * H:1 * H]
        f_g = sg[:, 1 * H:2 * H]
        o_g = sg[:, 2 * H:3 * H]
        c = f_g * c + i_g * g_g
        h = o_g * jnp.tanh(c)
        return h, c

    h, c = jax.lax.fori_loop(0, Ts, step, (h_scr[...], c_scr[...]),
                             unroll=min(Ts, 8))

    h_scr[...] = h
    c_scr[...] = c

    @pl.when(pl.program_id(0) == pl.num_programs(0) - 1)
    def _finalize():
        out_ref[...] = h.astype(out_ref.dtype)


def _largest_divisor_leq(n, cap):
    cap = max(1, min(n, cap))
    for d in range(cap, 0, -1):
        if n % d == 0:
            return d
    return 1


def w2n_model_svm_forward(tokens, emb_table, w_ih, w_hh, b_ih, b_hh, *,
                          time_tile=None, compute_dtype=jnp.bfloat16,
                          single_buffer_weights=False):
    """tokens: (B, S) int32.  Returns (B, H) float32 (LSTM output at t=S-1)."""
    B, S = tokens.shape
    E = emb_table.shape[1]
    H = w_hh.shape[1]
    H4 = 4 * H
    in_bytes = jnp.dtype(compute_dtype).itemsize

    # Pad batch up to the f32 sublane count (8) so every per-step slice of the
    # gate slab and the (Bp, H) state are sublane-aligned.
    Bp = max(8, -(-B // 8) * 8)

    # Embedding gather directly in time-major order (no extra HBM transpose).
    # TODO(synk): for large vocab / long S, gather embedding rows inside the
    # pipeline (scalar-prefetched tokens + pl.Element row-gather on emb_table).
    x_tm = jnp.take(emb_table, tokens.T, axis=0)                 # (S, B, E)
    if Bp != B:
        x_tm = jnp.pad(x_tm, ((0, 0), (0, Bp - B), (0, 0)))
    x_tm = x_tm.reshape(S * Bp, E).astype(compute_dtype)         # (S*Bp, E)

    # Reorder gates (i, f, g, o) -> (i, f, o, g) so the kernel applies sigmoid
    # to one contiguous 3H slab and tanh to the trailing H slab.
    perm = jnp.concatenate([
        jnp.arange(0, H), jnp.arange(H, 2 * H),
        jnp.arange(3 * H, 4 * H), jnp.arange(2 * H, 3 * H)])
    w_ih_t = jnp.transpose(w_ih[perm, :]).astype(compute_dtype)  # (E, 4H)
    w_hh_t = jnp.transpose(w_hh[perm, :]).astype(compute_dtype)  # (H, 4H)
    b = (b_ih + b_hh)[perm][None, :].astype(jnp.float32)         # (1, 4H)

    if time_tile is None:
        # Pick the largest time tile that fits a ~8 MiB per-tile budget
        # (double-buffered x tile + f32 gx scratch); single-tile grid when the
        # whole sequence fits.  Amortizes grid-step overhead and fills MXU M.
        per_step_bytes = Bp * (2 * E * in_bytes + 4 * H4)
        cap = max(1, (8 << 20) // max(1, per_step_bytes))
        time_tile = _largest_divisor_leq(S, cap)
    assert S % time_tile == 0, "time_tile must divide the sequence length"
    assert (time_tile * Bp) % 8 == 0
    n_tiles = S // time_tile

    # Constant-block weight specs; on v7x request single buffering so realistic
    # E=H weights are not double-buffered in the 64 MiB VMEM.
    def _const_spec(shape):
        if single_buffer_weights:
            return pl.BlockSpec(shape, lambda s: (0, 0),
                                pipeline_mode=pl.Buffered(1))
        return pl.BlockSpec(shape, lambda s: (0, 0))

    grid_spec = pltpu.PrefetchScalarGridSpec(
        num_scalar_prefetch=0,
        grid=(n_tiles,),
        in_specs=[
            pl.BlockSpec((time_tile * Bp, E), lambda s: (s, 0)),   # x tile
            _const_spec((E, H4)),                                  # W_ih^T
            _const_spec((H, H4)),                                  # W_hh^T
            _const_spec((1, H4)),                                  # bias
        ],
        out_specs=pl.BlockSpec((Bp, H), lambda s: (0, 0)),
        scratch_shapes=[
            pltpu.VMEM((time_tile * Bp, H4), jnp.float32),   # gx (input proj)
            pltpu.VMEM((Bp, H), jnp.float32),                # h carry
            pltpu.VMEM((Bp, H), jnp.float32),                # c carry
        ],
    )

    # Raise the scoped VMEM limit only when the estimated footprint exceeds
    # the conservative default (v5e 16 MiB / v6e 32 MiB).
    weight_bufs = 1 if single_buffer_weights else 2
    est = (2 * time_tile * Bp * E * in_bytes
           + weight_bufs * ((E + H) * H4 * in_bytes + H4 * 4)
           + time_tile * Bp * H4 * 4
           + 3 * Bp * H * 4)
    cp_kwargs = dict(dimension_semantics=("arbitrary",))   # true recurrence
    if est > (10 << 20):
        cp_kwargs["vmem_limit_bytes"] = int(min(est * 3 // 2 + (2 << 20),
                                                56 << 20))

    out = pl.pallas_call(
        lstm_last_kernel,
        out_shape=jax.ShapeDtypeStruct((Bp, H), jnp.float32),
        grid_spec=grid_spec,
        compiler_params=pltpu.CompilerParams(**cp_kwargs),
    )(x_tm, w_ih_t, w_hh_t, b)
    return out[:B]


def _lstm_reference(tokens, emb_table, w_ih, w_hh, b_ih, b_hh):
    """Pure-JAX reference matching torch.nn.LSTM (single layer, batch_first)."""
    x = jnp.take(emb_table, tokens, axis=0)              # (B, S, E)
    B, S, E = x.shape
    H = w_hh.shape[1]
    h = jnp.zeros((B, H), jnp.float32)
    c = jnp.zeros((B, H), jnp.float32)
    for t in range(S):
        gates = x[:, t, :] @ w_ih.T + h @ w_hh.T + b_ih + b_hh
        i_g = jax.nn.sigmoid(gates[:, 0 * H:1 * H])
        f_g = jax.nn.sigmoid(gates[:, 1 * H:2 * H])
        g_g = jnp.tanh(gates[:, 2 * H:3 * H])
        o_g = jax.nn.sigmoid(gates[:, 3 * H:4 * H])
        c = f_g * c + i_g * g_g
        h = o_g * jnp.tanh(c)
    return h


if __name__ == "__main__":
    # Module hyperparameters (small, consistent with the forward pass).
    vocab_size, embedding_dim, hidden_size, n_classes = 50, 32, 32, 4
    batch, seq = 2, 8

    key = jax.random.PRNGKey(0)
    k_tok, k_emb, k_wih, k_whh, k_bih, k_bhh = jax.random.split(key, 6)

    tokens = jax.random.randint(k_tok, (batch, seq), 0, vocab_size, dtype=jnp.int32)
    emb_table = 0.1 * jax.random.normal(k_emb, (vocab_size, embedding_dim), jnp.float32)
    w_ih = 0.1 * jax.random.normal(k_wih, (4 * hidden_size, embedding_dim), jnp.float32)
    w_hh = 0.1 * jax.random.normal(k_whh, (4 * hidden_size, hidden_size), jnp.float32)
    b_ih = 0.1 * jax.random.normal(k_bih, (4 * hidden_size,), jnp.float32)
    b_hh = 0.1 * jax.random.normal(k_bhh, (4 * hidden_size,), jnp.float32)

    ref = _lstm_reference(tokens, emb_table, w_ih, w_hh, b_ih, b_hh)

    # 1) Default (bf16 MXU operands, f32 accumulation, single-tile grid).
    out = w2n_model_svm_forward(tokens, emb_table, w_ih, w_hh, b_ih, b_hh)
    out = jax.block_until_ready(out)
    assert out.shape == (batch, hidden_size)
    assert jnp.allclose(out, ref, atol=2e-2, rtol=2e-2)

    # 2) f32 operands, time_tile=4 -> grid=(2,) exercising the cross-tile
    #    h/c carry path; matches the f32 torch reference exactly.
    out_f32 = w2n_model_svm_forward(tokens, emb_table, w_ih, w_hh, b_ih, b_hh,
                                    time_tile=4, compute_dtype=jnp.float32)
    out_f32 = jax.block_until_ready(out_f32)
    assert jnp.allclose(out_f32, ref, atol=1e-5, rtol=1e-5)

    print("KERNEL_OK")
</pallas_src>

<mosaic_0001>
module attributes {stable_mosaic.version = 11 : i64} {
  func.func @lstm_last_kernel(%arg0: i32, %arg1: memref<64x32xbf16, #tpu.memory_space<vmem>>, %arg2: memref<32x128xbf16, #tpu.memory_space<vmem>>, %arg3: memref<32x128xbf16, #tpu.memory_space<vmem>>, %arg4: memref<1x128xf32, #tpu.memory_space<vmem>>, %arg5: memref<8x32xf32, #tpu.memory_space<vmem>>, %arg6: memref<64x128xf32, #tpu.memory_space<vmem>>, %arg7: memref<8x32xf32, #tpu.memory_space<vmem>>, %arg8: memref<8x32xf32, #tpu.memory_space<vmem>>) attributes {dimension_semantics = [#tpu.dimension_semantics<arbitrary>], iteration_bounds = array<i64: 1>, scalar_prefetch = 0 : i64, scratch_operands = 3 : i64, tpu.core_type = #tpu.core_type<tc>, window_params = [{transform_indices = @transform_0, window_bounds = array<i64: 64, 32>}, {pipeline_mode = #tpu.pipeline_mode<synchronous>, transform_indices = @transform_1, window_bounds = array<i64: 32, 128>}, {pipeline_mode = #tpu.pipeline_mode<synchronous>, transform_indices = @transform_2, window_bounds = array<i64: 32, 128>}, {pipeline_mode = #tpu.pipeline_mode<synchronous>, transform_indices = @transform_3, window_bounds = array<i64: 1, 128>}, {pipeline_mode = #tpu.pipeline_mode<synchronous>, transform_indices = @transform_4, window_bounds = array<i64: 8, 32>}]} {
    %c0_i32 = arith.constant 0 : i32
    %0 = arith.cmpi eq, %arg0, %c0_i32 : i32
    %1 = arith.extui %0 : i1 to i32
    %c0_i32_0 = arith.constant 0 : i32
    %2 = arith.cmpi ne, %1, %c0_i32_0 : i32
    scf.if %2 {
      %cst_53 = arith.constant 0.000000e+00 : f32
      %202 = vector.broadcast %cst_53 : f32 to vector<8x32xf32>
      %c0_54 = arith.constant 0 : index
      %c0_55 = arith.constant 0 : index
      %203 = vector.load %arg7[%c0_54, %c0_55] : memref<8x32xf32, #tpu.memory_space<vmem>>, vector<8x32xf32>
      tpu.vector_store %arg7[%c0_54, %c0_55], %202 {strides = array<i32>} : memref<8x32xf32, #tpu.memory_space<vmem>>, vector<8x32xf32>,
      %cst_56 = arith.constant 0.000000e+00 : f32
      %204 = vector.broadcast %cst_56 : f32 to vector<8x32xf32>
      %c0_57 = arith.constant 0 : index
      %c0_58 = arith.constant 0 : index
      %205 = vector.load %arg8[%c0_57, %c0_58] : memref<8x32xf32, #tpu.memory_space<vmem>>, vector<8x32xf32>
      tpu.vector_store %arg8[%c0_57, %c0_58], %204 {strides = array<i32>} : memref<8x32xf32, #tpu.memory_space<vmem>>, vector<8x32xf32>,
    } else {
    }
    %c0 = arith.constant 0 : index
    %c0_1 = arith.constant 0 : index
    %3 = vector.load %arg1[%c0, %c0_1] : memref<64x32xbf16, #tpu.memory_space<vmem>>, vector<64x32xbf16>
    %c0_2 = arith.constant 0 : index
    %c0_3 = arith.constant 0 : index
    %4 = vector.load %arg2[%c0_2, %c0_3] : memref<32x128xbf16, #tpu.memory_space<vmem>>, vector<32x128xbf16>
    %cst = arith.constant dense<0.000000e+00> : vector<64x128xf32>
    %5 = tpu.matmul %3, %4, %cst {dimension_numbers = #tpu.dot_dimension_numbers<[1], [0], [0], [1], [0, 0, 1, 1], [], []>} : vector<64x32xbf16>, vector<32x128xbf16>, vector<64x128xf32> -> vector<64x128xf32>
    %c0_4 = arith.constant 0 : index
    %c0_5 = arith.constant 0 : index
    %6 = vector.load %arg4[%c0_4, %c0_5] : memref<1x128xf32, #tpu.memory_space<vmem>>, vector<1x128xf32>
    %7 = vector.broadcast %6 : vector<1x128xf32> to vector<64x128xf32>
    %8 = arith.addf %5, %7 : vector<64x128xf32>
    %c0_6 = arith.constant 0 : index
    %c0_7 = arith.constant 0 : index
    %9 = vector.load %arg6[%c0_6, %c0_7] : memref<64x128xf32, #tpu.memory_space<vmem>>, vector<64x128xf32>
    tpu.vector_store %arg6[%c0_6, %c0_7], %8 {strides = array<i32>} : memref<64x128xf32, #tpu.memory_space<vmem>>, vector<64x128xf32>,
    %c0_8 = arith.constant 0 : index
    %c0_9 = arith.constant 0 : index
    %10 = vector.load %arg3[%c0_8, %c0_9] : memref<32x128xbf16, #tpu.memory_space<vmem>>, vector<32x128xbf16>
    %c0_10 = arith.constant 0 : index
    %c0_11 = arith.constant 0 : index
    %11 = vector.load %arg7[%c0_10, %c0_11] : memref<8x32xf32, #tpu.memory_space<vmem>>, vector<8x32xf32>
    %c0_12 = arith.constant 0 : index
    %c0_13 = arith.constant 0 : index
    %12 = vector.load %arg8[%c0_12, %c0_13] : memref<8x32xf32, #tpu.memory_space<vmem>>, vector<8x32xf32>
    %c0_i32_14 = arith.constant 0 : i32
    %c8_i32 = arith.constant 8 : i32
    %13 = arith.muli %c0_i32_14, %c8_i32 : i32
    %14 = tpu.assume_multiple %13, 8 : i32
    %15 = arith.index_cast %14 : i32 to index
    %c0_15 = arith.constant 0 : index
    %16 = vector.load %arg6[%15, %c0_15] : memref<64x128xf32, #tpu.memory_space<vmem>>, vector<8x128xf32>
    %17 = arith.truncf %11 : vector<8x32xf32> to vector<8x32xbf16>
    %cst_16 = arith.constant dense<0.000000e+00> : vector<8x128xf32>
    %18 = tpu.matmul %17, %10, %cst_16 {dimension_numbers = #tpu.dot_dimension_numbers<[1], [0], [0], [1], [0, 0, 1, 1], [], []>} : vector<8x32xbf16>, vector<32x128xbf16>, vector<8x128xf32> -> vector<8x128xf32>
    %19 = arith.addf %16, %18 : vector<8x128xf32>
    %20 = vector.extract_strided_slice %19 {offsets = [0, 0], sizes = [8, 96], strides = [1, 1]} : vector<8x128xf32> to vector<8x96xf32>
    %21 = arith.negf %20 : vector<8x96xf32>
    %22 = math.exp %21 : vector<8x96xf32>
    %cst_17 = arith.constant 1.000000e+00 : f32
    %23 = vector.broadcast %cst_17 : f32 to vector<8x96xf32>
    %24 = arith.addf %23, %22 : vector<8x96xf32>
    %25 = arith.divf %23, %24 : vector<8x96xf32>
    %26 = vector.extract_strided_slice %19 {offsets = [0, 96], sizes = [8, 32], strides = [1, 1]} : vector<8x128xf32> to vector<8x32xf32>
    %27 = math.tanh %26 : vector<8x32xf32>
    %28 = vector.extract_strided_slice %25 {offsets = [0, 0], sizes = [8, 32], strides = [1, 1]} : vector<8x96xf32> to vector<8x32xf32>
    %29 = vector.extract_strided_slice %25 {offsets = [0, 32], sizes = [8, 32], strides = [1, 1]} : vector<8x96xf32> to vector<8x32xf32>
    %30 = vector.extract_strided_slice %25 {offsets = [0, 64], sizes = [8, 32], strides = [1, 1]} : vector<8x96xf32> to vector<8x32xf32>
    %31 = arith.mulf %29, %12 : vector<8x32xf32>
    %32 = arith.mulf %28, %27 : vector<8x32xf32>
    %33 = arith.addf %31, %32 : vector<8x32xf32>
    %34 = math.tanh %33 : vector<8x32xf32>
    %35 = arith.mulf %30, %34 : vector<8x32xf32>
    %c1_i32 = arith.constant 1 : i32
    %c8_i32_18 = arith.constant 8 : i32
    %36 = arith.muli %c1_i32, %c8_i32_18 : i32
    %37 = tpu.assume_multiple %36, 8 : i32
    %38 = arith.index_cast %37 : i32 to index
    %c0_19 = arith.constant 0 : index
    %39 = vector.load %arg6[%38, %c0_19] : memref<64x128xf32, #tpu.memory_space<vmem>>, vector<8x128xf32>
    %40 = arith.truncf %35 : vector<8x32xf32> to vector<8x32xbf16>
    %cst_20 = arith.constant dense<0.000000e+00> : vector<8x128xf32>
    %41 = tpu.matmul %40, %10, %cst_20 {dimension_numbers = #tpu.dot_dimension_numbers<[1], [0], [0], [1], [0, 0, 1, 1], [], []>} : vector<8x32xbf16>, vector<32x128xbf16>, vector<8x128xf32> -> vector<8x128xf32>
    %42 = arith.addf %39, %41 : vector<8x128xf32>
    %43 = vector.extract_strided_slice %42 {offsets = [0, 0], sizes = [8, 96], strides = [1, 1]} : vector<8x128xf32> to vector<8x96xf32>
    %44 = arith.negf %43 : vector<8x96xf32>
    %45 = math.exp %44 : vector<8x96xf32>
    %cst_21 = arith.constant 1.000000e+00 : f32
    %46 = vector.broadcast %cst_21 : f32 to vector<8x96xf32>
    %47 = arith.addf %46, %45 : vector<8x96xf32>
    %48 = arith.divf %46, %47 : vector<8x96xf32>
    %49 = vector.extract_strided_slice %42 {offsets = [0, 96], sizes = [8, 32], strides = [1, 1]} : vector<8x128xf32> to vector<8x32xf32>
    %50 = math.tanh %49 : vector<8x32xf32>
    %51 = vector.extract_strided_slice %48 {offsets = [0, 0], sizes = [8, 32], strides = [1, 1]} : vector<8x96xf32> to vector<8x32xf32>
    %52 = vector.extract_strided_slice %48 {offsets = [0, 32], sizes = [8, 32], strides = [1, 1]} : vector<8x96xf32> to vector<8x32xf32>
    %53 = vector.extract_strided_slice %48 {offsets = [0, 64], sizes = [8, 32], strides = [1, 1]} : vector<8x96xf32> to vector<8x32xf32>
    %54 = arith.mulf %52, %33 : vector<8x32xf32>
    %55 = arith.mulf %51, %50 : vector<8x32xf32>
    %56 = arith.addf %54, %55 : vector<8x32xf32>
    %57 = math.tanh %56 : vector<8x32xf32>
    %58 = arith.mulf %53, %57 : vector<8x32xf32>
    %c2_i32 = arith.constant 2 : i32
    %c8_i32_22 = arith.constant 8 : i32
    %59 = arith.muli %c2_i32, %c8_i32_22 : i32
    %60 = tpu.assume_multiple %59, 8 : i32
    %61 = arith.index_cast %60 : i32 to index
    %c0_23 = arith.constant 0 : index
    %62 = vector.load %arg6[%61, %c0_23] : memref<64x128xf32, #tpu.memory_space<vmem>>, vector<8x128xf32>
    %63 = arith.truncf %58 : vector<8x32xf32> to vector<8x32xbf16>
    %cst_24 = arith.constant dense<0.000000e+00> : vector<8x128xf32>
    %64 = tpu.matmul %63, %10, %cst_24 {dimension_numbers = #tpu.dot_dimension_numbers<[1], [0], [0], [1], [0, 0, 1, 1], [], []>} : vector<8x32xbf16>, vector<32x128xbf16>, vector<8x128xf32> -> vector<8x128xf32>
    %65 = arith.addf %62, %64 : vector<8x128xf32>
    %66 = vector.extract_strided_slice %65 {offsets = [0, 0], sizes = [8, 96], strides = [1, 1]} : vector<8x128xf32> to vector<8x96xf32>
    %67 = arith.negf %66 : vector<8x96xf32>
    %68 = math.exp %67 : vector<8x96xf32>
    %cst_25 = arith.constant 1.000000e+00 : f32
    %69 = vector.broadcast %cst_25 : f32 to vector<8x96xf32>
    %70 = arith.addf %69, %68 : vector<8x96xf32>
    %71 = arith.divf %69, %70 : vector<8x96xf32>
    %72 = vector.extract_strided_slice %65 {offsets = [0, 96], sizes = [8, 32], strides = [1, 1]} : vector<8x128xf32> to vector<8x32xf32>
    %73 = math.tanh %72 : vector<8x32xf32>
    %74 = vector.extract_strided_slice %71 {offsets = [0, 0], sizes = [8, 32], strides = [1, 1]} : vector<8x96xf32> to vector<8x32xf32>
    %75 = vector.extract_strided_slice %71 {offsets = [0, 32], sizes = [8, 32], strides = [1, 1]} : vector<8x96xf32> to vector<8x32xf32>
    %76 = vector.extract_strided_slice %71 {offsets = [0, 64], sizes = [8, 32], strides = [1, 1]} : vector<8x96xf32> to vector<8x32xf32>
    %77 = arith.mulf %75, %56 : vector<8x32xf32>
    %78 = arith.mulf %74, %73 : vector<8x32xf32>
    %79 = arith.addf %77, %78 : vector<8x32xf32>
    %80 = math.tanh %79 : vector<8x32xf32>
    %81 = arith.mulf %76, %80 : vector<8x32xf32>
    %c3_i32 = arith.constant 3 : i32
    %c8_i32_26 = arith.constant 8 : i32
    %82 = arith.muli %c3_i32, %c8_i32_26 : i32
    %83 = tpu.assume_multiple %82, 8 : i32
    %84 = arith.index_cast %83 : i32 to index
    %c0_27 = arith.constant 0 : index
    %85 = vector.load %arg6[%84, %c0_27] : memref<64x128xf32, #tpu.memory_space<vmem>>, vector<8x128xf32>
    %86 = arith.truncf %81 : vector<8x32xf32> to vector<8x32xbf16>
    %cst_28 = arith.constant dense<0.000000e+00> : vector<8x128xf32>
    %87 = tpu.matmul %86, %10, %cst_28 {dimension_numbers = #tpu.dot_dimension_numbers<[1], [0], [0], [1], [0, 0, 1, 1], [], []>} : vector<8x32xbf16>, vector<32x128xbf16>, vector<8x128xf32> -> vector<8x128xf32>
    %88 = arith.addf %85, %87 : vector<8x128xf32>
    %89 = vector.extract_strided_slice %88 {offsets = [0, 0], sizes = [8, 96], strides = [1, 1]} : vector<8x128xf32> to vector<8x96xf32>
    %90 = arith.negf %89 : vector<8x96xf32>
    %91 = math.exp %90 : vector<8x96xf32>
    %cst_29 = arith.constant 1.000000e+00 : f32
    %92 = vector.broadcast %cst_29 : f32 to vector<8x96xf32>
    %93 = arith.addf %92, %91 : vector<8x96xf32>
    %94 = arith.divf %92, %93 : vector<8x96xf32>
    %95 = vector.extract_strided_slice %88 {offsets = [0, 96], sizes = [8, 32], strides = [1, 1]} : vector<8x128xf32> to vector<8x32xf32>
    %96 = math.tanh %95 : vector<8x32xf32>
    %97 = vector.extract_strided_slice %94 {offsets = [0, 0], sizes = [8, 32], strides = [1, 1]} : vector<8x96xf32> to vector<8x32xf32>
    %98 = vector.extract_strided_slice %94 {offsets = [0, 32], sizes = [8, 32], strides = [1, 1]} : vector<8x96xf32> to vector<8x32xf32>
    %99 = vector.extract_strided_slice %94 {offsets = [0, 64], sizes = [8, 32], strides = [1, 1]} : vector<8x96xf32> to vector<8x32xf32>
    %100 = arith.mulf %98, %79 : vector<8x32xf32>
    %101 = arith.mulf %97, %96 : vector<8x32xf32>
    %102 = arith.addf %100, %101 : vector<8x32xf32>
    %103 = math.tanh %102 : vector<8x32xf32>
    %104 = arith.mulf %99, %103 : vector<8x32xf32>
    %c4_i32 = arith.constant 4 : i32
    %c8_i32_30 = arith.constant 8 : i32
    %105 = arith.muli %c4_i32, %c8_i32_30 : i32
    %106 = tpu.assume_multiple %105, 8 : i32
    %107 = arith.index_cast %106 : i32 to index
    %c0_31 = arith.constant 0 : index
    %108 = vector.load %arg6[%107, %c0_31] : memref<64x128xf32, #tpu.memory_space<vmem>>, vector<8x128xf32>
    %109 = arith.truncf %104 : vector<8x32xf32> to vector<8x32xbf16>
    %cst_32 = arith.constant dense<0.000000e+00> : vector<8x128xf32>
    %110 = tpu.matmul %109, %10, %cst_32 {dimension_numbers = #tpu.dot_dimension_numbers<[1], [0], [0], [1], [0, 0, 1, 1], [], []>} : vector<8x32xbf16>, vector<32x128xbf16>, vector<8x128xf32> -> vector<8x128xf32>
    %111 = arith.addf %108, %110 : vector<8x128xf32>
    %112 = vector.extract_strided_slice %111 {offsets = [0, 0], sizes = [8, 96], strides = [1, 1]} : vector<8x128xf32> to vector<8x96xf32>
    %113 = arith.negf %112 : vector<8x96xf32>
    %114 = math.exp %113 : vector<8x96xf32>
    %cst_33 = arith.constant 1.000000e+00 : f32
    %115 = vector.broadcast %cst_33 : f32 to vector<8x96xf32>
    %116 = arith.addf %115, %114 : vector<8x96xf32>
    %117 = arith.divf %115, %116 : vector<8x96xf32>
    %118 = vector.extract_strided_slice %111 {offsets = [0, 96], sizes = [8, 32], strides = [1, 1]} : vector<8x128xf32> to vector<8x32xf32>
    %119 = math.tanh %118 : vector<8x32xf32>
    %120 = vector.extract_strided_slice %117 {offsets = [0, 0], sizes = [8, 32], strides = [1, 1]} : vector<8x96xf32> to vector<8x32xf32>
    %121 = vector.extract_strided_slice %117 {offsets = [0, 32], sizes = [8, 32], strides = [1, 1]} : vector<8x96xf32> to vector<8x32xf32>
    %122 = vector.extract_strided_slice %117 {offsets = [0, 64], sizes = [8, 32], strides = [1, 1]} : vector<8x96xf32> to vector<8x32xf32>
    %123 = arith.mulf %121, %102 : vector<8x32xf32>
    %124 = arith.mulf %120, %119 : vector<8x32xf32>
    %125 = arith.addf %123, %124 : vector<8x32xf32>
    %126 = math.tanh %125 : vector<8x32xf32>
    %127 = arith.mulf %122, %126 : vector<8x32xf32>
    %c5_i32 = arith.constant 5 : i32
    %c8_i32_34 = arith.constant 8 : i32
    %128 = arith.muli %c5_i32, %c8_i32_34 : i32
    %129 = tpu.assume_multiple %128, 8 : i32
    %130 = arith.index_cast %129 : i32 to index
    %c0_35 = arith.constant 0 : index
    %131 = vector.load %arg6[%130, %c0_35] : memref<64x128xf32, #tpu.memory_space<vmem>>, vector<8x128xf32>
    %132 = arith.truncf %127 : vector<8x32xf32> to vector<8x32xbf16>
    %cst_36 = arith.constant dense<0.000000e+00> : vector<8x128xf32>
    %133 = tpu.matmul %132, %10, %cst_36 {dimension_numbers = #tpu.dot_dimension_numbers<[1], [0], [0], [1], [0, 0, 1, 1], [], []>} : vector<8x32xbf16>, vector<32x128xbf16>, vector<8x128xf32> -> vector<8x128xf32>
    %134 = arith.addf %131, %133 : vector<8x128xf32>
    %135 = vector.extract_strided_slice %134 {offsets = [0, 0], sizes = [8, 96], strides = [1, 1]} : vector<8x128xf32> to vector<8x96xf32>
    %136 = arith.negf %135 : vector<8x96xf32>
    %137 = math.exp %136 : vector<8x96xf32>
    %cst_37 = arith.constant 1.000000e+00 : f32
    %138 = vector.broadcast %cst_37 : f32 to vector<8x96xf32>
    %139 = arith.addf %138, %137 : vector<8x96xf32>
    %140 = arith.divf %138, %139 : vector<8x96xf32>
    %141 = vector.extract_strided_slice %134 {offsets = [0, 96], sizes = [8, 32], strides = [1, 1]} : vector<8x128xf32> to vector<8x32xf32>
    %142 = math.tanh %141 : vector<8x32xf32>
    %143 = vector.extract_strided_slice %140 {offsets = [0, 0], sizes = [8, 32], strides = [1, 1]} : vector<8x96xf32> to vector<8x32xf32>
    %144 = vector.extract_strided_slice %140 {offsets = [0, 32], sizes = [8, 32], strides = [1, 1]} : vector<8x96xf32> to vector<8x32xf32>
    %145 = vector.extract_strided_slice %140 {offsets = [0, 64], sizes = [8, 32], strides = [1, 1]} : vector<8x96xf32> to vector<8x32xf32>
    %146 = arith.mulf %144, %125 : vector<8x32xf32>
    %147 = arith.mulf %143, %142 : vector<8x32xf32>
    %148 = arith.addf %146, %147 : vector<8x32xf32>
    %149 = math.tanh %148 : vector<8x32xf32>
    %150 = arith.mulf %145, %149 : vector<8x32xf32>
    %c6_i32 = arith.constant 6 : i32
    %c8_i32_38 = arith.constant 8 : i32
    %151 = arith.muli %c6_i32, %c8_i32_38 : i32
    %152 = tpu.assume_multiple %151, 8 : i32
    %153 = arith.index_cast %152 : i32 to index
    %c0_39 = arith.constant 0 : index
    %154 = vector.load %arg6[%153, %c0_39] : memref<64x128xf32, #tpu.memory_space<vmem>>, vector<8x128xf32>
    %155 = arith.truncf %150 : vector<8x32xf32> to vector<8x32xbf16>
    %cst_40 = arith.constant dense<0.000000e+00> : vector<8x128xf32>
    %156 = tpu.matmul %155, %10, %cst_40 {dimension_numbers = #tpu.dot_dimension_numbers<[1], [0], [0], [1], [0, 0, 1, 1], [], []>} : vector<8x32xbf16>, vector<32x128xbf16>, vector<8x128xf32> -> vector<8x128xf32>
    %157 = arith.addf %154, %156 : vector<8x128xf32>
    %158 = vector.extract_strided_slice %157 {offsets = [0, 0], sizes = [8, 96], strides = [1, 1]} : vector<8x128xf32> to vector<8x96xf32>
    %159 = arith.negf %158 : vector<8x96xf32>
    %160 = math.exp %159 : vector<8x96xf32>
    %cst_41 = arith.constant 1.000000e+00 : f32
    %161 = vector.broadcast %cst_41 : f32 to vector<8x96xf32>
    %162 = arith.addf %161, %160 : vector<8x96xf32>
    %163 = arith.divf %161, %162 : vector<8x96xf32>
    %164 = vector.extract_strided_slice %157 {offsets = [0, 96], sizes = [8, 32], strides = [1, 1]} : vector<8x128xf32> to vector<8x32xf32>
    %165 = math.tanh %164 : vector<8x32xf32>
    %166 = vector.extract_strided_slice %163 {offsets = [0, 0], sizes = [8, 32], strides = [1, 1]} : vector<8x96xf32> to vector<8x32xf32>
    %167 = vector.extract_strided_slice %163 {offsets = [0, 32], sizes = [8, 32], strides = [1, 1]} : vector<8x96xf32> to vector<8x32xf32>
    %168 = vector.extract_strided_slice %163 {offsets = [0, 64], sizes = [8, 32], strides = [1, 1]} : vector<8x96xf32> to vector<8x32xf32>
    %169 = arith.mulf %167, %148 : vector<8x32xf32>
    %170 = arith.mulf %166, %165 : vector<8x32xf32>
    %171 = arith.addf %169, %170 : vector<8x32xf32>
    %172 = math.tanh %171 : vector<8x32xf32>
    %173 = arith.mulf %168, %172 : vector<8x32xf32>
    %c7_i32 = arith.constant 7 : i32
    %c8_i32_42 = arith.constant 8 : i32
    %174 = arith.muli %c7_i32, %c8_i32_42 : i32
    %175 = tpu.assume_multiple %174, 8 : i32
    %176 = arith.index_cast %175 : i32 to index
    %c0_43 = arith.constant 0 : index
    %177 = vector.load %arg6[%176, %c0_43] : memref<64x128xf32, #tpu.memory_space<vmem>>, vector<8x128xf32>
    %178 = arith.truncf %173 : vector<8x32xf32> to vector<8x32xbf16>
    %cst_44 = arith.constant dense<0.000000e+00> : vector<8x128xf32>
    %179 = tpu.matmul %178, %10, %cst_44 {dimension_numbers = #tpu.dot_dimension_numbers<[1], [0], [0], [1], [0, 0, 1, 1], [], []>} : vector<8x32xbf16>, vector<32x128xbf16>, vector<8x128xf32> -> vector<8x128xf32>
    %180 = arith.addf %177, %179 : vector<8x128xf32>
    %181 = vector.extract_strided_slice %180 {offsets = [0, 0], sizes = [8, 96], strides = [1, 1]} : vector<8x128xf32> to vector<8x96xf32>
    %182 = arith.negf %181 : vector<8x96xf32>
    %183 = math.exp %182 : vector<8x96xf32>
    %cst_45 = arith.constant 1.000000e+00 : f32
    %184 = vector.broadcast %cst_45 : f32 to vector<8x96xf32>
    %185 = arith.addf %184, %183 : vector<8x96xf32>
    %186 = arith.divf %184, %185 : vector<8x96xf32>
    %187 = vector.extract_strided_slice %180 {offsets = [0, 96], sizes = [8, 32], strides = [1, 1]} : vector<8x128xf32> to vector<8x32xf32>
    %188 = math.tanh %187 : vector<8x32xf32>
    %189 = vector.extract_strided_slice %186 {offsets = [0, 0], sizes = [8, 32], strides = [1, 1]} : vector<8x96xf32> to vector<8x32xf32>
    %190 = vector.extract_strided_slice %186 {offsets = [0, 32], sizes = [8, 32], strides = [1, 1]} : vector<8x96xf32> to vector<8x32xf32>
    %191 = vector.extract_strided_slice %186 {offsets = [0, 64], sizes = [8, 32], strides = [1, 1]} : vector<8x96xf32> to vector<8x32xf32>
    %192 = arith.mulf %190, %171 : vector<8x32xf32>
    %193 = arith.mulf %189, %188 : vector<8x32xf32>
    %194 = arith.addf %192, %193 : vector<8x32xf32>
    %195 = math.tanh %194 : vector<8x32xf32>
    %196 = arith.mulf %191, %195 : vector<8x32xf32>
    %c8_i32_46 = arith.constant 8 : i32
    %c0_47 = arith.constant 0 : index
    %c0_48 = arith.constant 0 : index
    %197 = vector.load %arg7[%c0_47, %c0_48] : memref<8x32xf32, #tpu.memory_space<vmem>>, vector<8x32xf32>
    tpu.vector_store %arg7[%c0_47, %c0_48], %196 {strides = array<i32>} : memref<8x32xf32, #tpu.memory_space<vmem>>, vector<8x32xf32>,
    %c0_49 = arith.constant 0 : index
    %c0_50 = arith.constant 0 : index
    %198 = vector.load %arg8[%c0_49, %c0_50] : memref<8x32xf32, #tpu.memory_space<vmem>>, vector<8x32xf32>
    tpu.vector_store %arg8[%c0_49, %c0_50], %194 {strides = array<i32>} : memref<8x32xf32, #tpu.memory_space<vmem>>, vector<8x32xf32>,
    %c0_i32_51 = arith.constant 0 : i32
    %199 = arith.cmpi eq, %arg0, %c0_i32_51 : i32
    %200 = arith.extui %199 : i1 to i32
    %c0_i32_52 = arith.constant 0 : i32
    %201 = arith.cmpi ne, %200, %c0_i32_52 : i32
    scf.if %201 {
      %c0_53 = arith.constant 0 : index
      %c0_54 = arith.constant 0 : index
      %202 = vector.load %arg5[%c0_53, %c0_54] : memref<8x32xf32, #tpu.memory_space<vmem>>, vector<8x32xf32>
      tpu.vector_store %arg5[%c0_53, %c0_54], %196 {strides = array<i32>} : memref<8x32xf32, #tpu.memory_space<vmem>>, vector<8x32xf32>,
    } else {
    }
    return
  }
  func.func @transform_0(%arg0: i32) -> (i32, i32) {
    %c0_i32 = arith.constant 0 : i32
    %c0_i32_0 = arith.constant 0 : i32
    return %arg0, %c0_i32 : i32, i32
  }
  func.func @transform_1(%arg0: i32) -> (i32, i32) {
    %c0_i32 = arith.constant 0 : i32
    %c0_i32_0 = arith.constant 0 : i32
    %c0_i32_1 = arith.constant 0 : i32
    return %c0_i32, %c0_i32_0 : i32, i32
  }
  func.func @transform_2(%arg0: i32) -> (i32, i32) {
    %c0_i32 = arith.constant 0 : i32
    %c0_i32_0 = arith.constant 0 : i32
    %c0_i32_1 = arith.constant 0 : i32
    return %c0_i32, %c0_i32_0 : i32, i32
  }
  func.func @transform_3(%arg0: i32) -> (i32, i32) {
    %c0_i32 = arith.constant 0 : i32
    %c0_i32_0 = arith.constant 0 : i32
    %c0_i32_1 = arith.constant 0 : i32
    return %c0_i32, %c0_i32_0 : i32, i32
  }
  func.func @transform_4(%arg0: i32) -> (i32, i32) {
    %c0_i32 = arith.constant 0 : i32
    %c0_i32_0 = arith.constant 0 : i32
    %c0_i32_1 = arith.constant 0 : i32
    return %c0_i32, %c0_i32_0 : i32, i32
  }
}

</mosaic_0001>

<llo_original>
// kernel: tpu_custom_call.1
$region0: #{tpu_custom_call.1}
  #allocation0 [shape = 'u32[]', space=smem, size = 0x4, offset = 0x4, fixed_abs, tag = 'smem constant byte address 0x4 - core index']
  #allocation1 [shape = 'u32[72,128]{1,0:T(1,128)}', space=vmem, size = 0x9000, scoped, tag = 'internal scratch']
  #allocation2 [shape = 'f32[64,128]{1,0:T(8,128)}', space=vmem, size = 0x8000, scoped, tag = 'scratch operand']
  #allocation3 [shape = 'f32[8,32]{1,0:T(8,128)}', space=vmem, size = 0x1000, scoped, tag = 'scratch operand']
  #allocation4 [shape = 'f32[8,32]{1,0:T(8,128)}', space=vmem, size = 0x1000, scoped, tag = 'scratch operand']
  %s0 = inlined_call_operand.vmem [shape: bf16[64,32], index: 0, kind: input, shape index: {}]
  %s1 = inlined_call_operand.vmem [shape: bf16[32,128], index: 1, kind: input, shape index: {}]
  %s2 = inlined_call_operand.vmem [shape: bf16[32,128], index: 2, kind: input, shape index: {}]
  %s3 = inlined_call_operand.vmem [shape: f32[1,128], index: 3, kind: input, shape index: {}]
  %s4 = inlined_call_operand.hbm [shape: f32[8,32], index: 4, kind: output, shape index: {}]
  %s5 = sld [smem:[#allocation0]]
  $region34: #{tpu_custom_call.1} parent=0
    _
  %s7 = ssub.s32 1, %s5
  %s8 = scalar_select 0, %s7, %s5
  $region1: #{tpu_custom_call.1} parent=0
    #allocation5 [shape = 'u8[4096]{0}', space=vmem, size = 0x1000, scoped, tag = 'output window, operand 0, single buffered']
    #allocation6 [shape = 's32[1]{0}', space=sflag, size = 0x4, scoped, tag = 'scoped memory for tpu_custom_call.1']
    %9 = vsyncpa [#allocation6], 0
    // Predicated region
    $region2: #{tpu_custom_call.1} parent=1 // pred_check
      _
    $region3: #{tpu_custom_call.1} parent=1 // pred_check_branch
      %11 = sbr.rel (0) target = $region5
    $region4: #{tpu_custom_call.1} parent=1 // pred_region
      _
    $region5: #{tpu_custom_call.1} parent=1 // pred_fallthru
      _
    // Predicated region
    $region6: #{tpu_custom_call.1} parent=1 // pred_check
      _
    $region7: #{tpu_custom_call.1} parent=1 // pred_check_branch
      %13 = sbr.rel (0) target = $region9
    $region8: #{tpu_custom_call.1} parent=1 // pred_region
      _
    $region9: #{tpu_custom_call.1} parent=1 // pred_fallthru
      _
    // Predicated region
    $region10: #{tpu_custom_call.1} parent=1 // pred_check
      _
    $region11: #{tpu_custom_call.1} parent=1 // pred_check_branch
      %15 = sbr.rel (0) target = $region13
    $region12: #{tpu_custom_call.1} parent=1 // pred_region
      _
    $region13: #{tpu_custom_call.1} parent=1 // pred_fallthru
      _
    // Predicated region
    $region14: #{tpu_custom_call.1} parent=1 // pred_check
      _
    $region15: #{tpu_custom_call.1} parent=1 // pred_check_branch
      %17 = sbr.rel (0) target = $region17
    $region16: #{tpu_custom_call.1} parent=1 // pred_region
      _
    $region17: #{tpu_custom_call.1} parent=1 // pred_fallthru
      _
    %p19 = scmp.eq.s32.totalorder 0, 0
    // Predicated region
    $region18: #{tpu_custom_call.1} parent=1 // pred_check
      %p20 = pneg %p19
    $region19: #{tpu_custom_call.1} parent=1 // pred_check_branch
      %22 = sbr.rel (%p20) target = $region21
    $region20: #{tpu_custom_call.1} parent=1 // pred_region
      %vm23 = vcmask 261120
      %24 = vst.msk [vmem:[#allocation3] sm:$0xff] %vm23, 0.0
      %25 = vst.msk [vmem:[#allocation4] sm:$0xff] %vm23, 0.0
    $region21: #{tpu_custom_call.1} parent=1 // pred_fallthru
      _
    %v26 = vld [vmem:[%s0] sm:$0xf]
    %v27 = vld [vmem:[%s0 + $0x4] sm:$0xf]
    %v28 = vld [vmem:[%s0 + $0x8] sm:$0xf]
    %v29 = vld [vmem:[%s0 + $0xc] sm:$0xf]
    %v30 = vld [vmem:[%s0 + $0x10] sm:$0xf]
    %v31 = vld [vmem:[%s0 + $0x14] sm:$0xf]
    %v32 = vld [vmem:[%s0 + $0x18] sm:$0xf]
    %v33 = vld [vmem:[%s0 + $0x1c] sm:$0xf]
    %v34 = vld [vmem:[%s1] sm:$0xf]
    %v35 = vld [vmem:[%s1 + $0x4] sm:$0xf]
    %v36 = vld [vmem:[%s1 + $0x8] sm:$0xf]
    %v37 = vld [vmem:[%s1 + $0xc] sm:$0xf]
    %v38 = vld [vmem:[%s3] sm:$0x1]
    %v40 = vperm.slane %v38, 0
    %v50 = vunpack.c.l.b16 %v26
    %v51 = vunpack.c.l.b16 %v27
    %v52 = vunpack.c.l.b16 %v28
    %v53 = vunpack.c.l.b16 %v29
    %v54 = vunpack.c.l.b16 %v30
    %v55 = vunpack.c.l.b16 %v31
    %v56 = vunpack.c.l.b16 %v32
    %v57 = vunpack.c.l.b16 %v33
    %v58 = vpack.c.b16 %v51, %v50
    %v59 = vpack.c.b16 %v53, %v52
    %v60 = vpack.c.b16 %v55, %v54
    %v61 = vpack.c.b16 %v57, %v56
    %v66 = vunpack.c.l.b16 %v34
    %v67 = vunpack.c.l.b16 %v35
    %v68 = vunpack.c.l.b16 %v36
    %v69 = vunpack.c.l.b16 %v37
    %v70 = vpack.c.b16 %v67, %v66
    %v71 = vpack.c.b16 %v69, %v68
    %vm74 = vcmask 261120
    %v76 = vsel %vm74, %v58, 0
    %v79 = vsel %vm74, %v59, 0
    %v82 = vsel %vm74, %v60, 0
    %v85 = vsel %vm74, %v61, 0
    %87 = vmatpush.bf16.msra.mxu0 0
    %88 = vmatpush.bf16.msra.mxu0 0
    %89 = vmatpush.bf16.msra.mxu0 0
    %90 = vmatpush.bf16.msra.mxu0 0
    %91 = vmatpush.bf16.msra.mxu0 0
    %92 = vmatpush.bf16.msra.mxu0 0
    %93 = vmatpush.bf16.msra.mxu0 %v71
    %94 = vmatpush.bf16.msra.mxu0 %v70
    %95 = vmatmul.bf16.gmra.mxu0 %v76
    %v96 = vpop.f32.mrf.mxu0
    %v97 = vadd.f32 %v40, %v96
    %v98 = vpop.f32.mrf.mxu0
    %v99 = vadd.f32 %v40, %v98
    %100 = vmatmul.bf16.gmra.mxu0 %v79
    %v101 = vpop.f32.mrf.mxu0
    %v102 = vadd.f32 %v40, %v101
    %v103 = vpop.f32.mrf.mxu0
    %v104 = vadd.f32 %v40, %v103
    %105 = vmatmul.bf16.gmra.mxu0 %v82
    %v106 = vpop.f32.mrf.mxu0
    %v107 = vadd.f32 %v40, %v106
    %v108 = vpop.f32.mrf.mxu0
    %v109 = vadd.f32 %v40, %v108
    %110 = vmatmul.bf16.gmra.mxu0 %v85
    %v111 = vpop.f32.mrf.mxu0
    %v112 = vadd.f32 %v40, %v111
    %v113 = vpop.f32.mrf.mxu0
    %v114 = vadd.f32 %v40, %v113
    %115 = vdwg.mxu0
    %116 = vst [vmem:[#allocation2] sm:$0xff] %v97
    %117 = vst [vmem:[#allocation2 + $0x8] sm:$0xff] %v99
    %118 = vst [vmem:[#allocation2 + $0x10] sm:$0xff] %v102
    %119 = vst [vmem:[#allocation2 + $0x18] sm:$0xff] %v104
    %120 = vst [vmem:[#allocation2 + $0x20] sm:$0xff] %v107
    %121 = vst [vmem:[#allocation2 + $0x28] sm:$0xff] %v109
    %122 = vst [vmem:[#allocation2 + $0x30] sm:$0xff] %v112
    %123 = vst [vmem:[#allocation2 + $0x38] sm:$0xff] %v114
    %v124 = vld [vmem:[%s2] sm:$0xf]
    %v125 = vld [vmem:[%s2 + $0x4] sm:$0xf]
    %v126 = vld [vmem:[%s2 + $0x8] sm:$0xf]
    %v127 = vld [vmem:[%s2 + $0xc] sm:$0xf]
    %v128 = vld [vmem:[#allocation3] sm:$0xff]
    %v129 = vld [vmem:[#allocation4] sm:$0xff]
    %v130 = vld [vmem:[#allocation2] sm:$0xff]
    %v131 = vpack.c.bf16 %v128, %v128
    %v136 = vunpack.c.l.b16 %v124
    %v137 = vunpack.c.l.b16 %v125
    %v138 = vunpack.c.l.b16 %v126
    %v139 = vunpack.c.l.b16 %v127
    %v140 = vpack.c.b16 %v137, %v136
    %v141 = vpack.c.b16 %v139, %v138
    %v145 = vsel %vm74, %v131, 0
    %147 = vmatpush.bf16.msra.mxu0 0
    %148 = vmatpush.bf16.msra.mxu0 0
    %149 = vmatpush.bf16.msra.mxu0 0
    %150 = vmatpush.bf16.msra.mxu0 0
    %151 = vmatpush.bf16.msra.mxu0 0
    %152 = vmatpush.bf16.msra.mxu0 0
    %153 = vmatpush.bf16.msra.mxu0 %v141
    %154 = vmatpush.bf16.msra.mxu0 %v140
    %155 = vmatmul.bf16.gmra.mxu0 %v145
    %v156 = vpop.f32.mrf.mxu0
    %v157 = vadd.f32 0.0, %v156
    %v158 = vpop.f32.mrf.mxu0
    %159 = vdwg.mxu0
    %v160 = vadd.f32 %v130, %v157
    %v161 = vxor.u32 %v160, 2147483648
    %v162 = vmul.f32 %v161, 1.442695
    %v163 = vpow.pop %v162
    %v164 = vadd.f32 %v163, 1.0
    %v165 = vrcp.pop %v164
    %v166 = vmul.f32 %v164, %v165
    %v167 = vsub.f32 1.0, %v166
    %v168 = vmul.f32 %v165, %v167
    %v169 = vadd.f32 %v165, %v168
    %vm170 = vweird.f32 %v164
    %vm171 = vweird.f32 %v165
    %vm172 = vmor %vm170, %vm171
    %v173 = vsel %vm172, %v165, %v169
    %v174 = vand.u32 2147483647, %v164
    %vm175 = vcmp.eq.f32.partialorder %v174, 8.507059e+37
    %v176 = vand.u32 %v164, 2147483648
    %v177 = vor.u32 1.1754944e-38, %v176
    %v178 = vsel %vm175, %v177, %v173
    %v179 = vmul.f32 1.0, %v178
    %v180 = vtanh.pop %v160
    %182 = vrot.lane.b32.xlu0 %v129, 32
    %v183 = vpop.permute.xlu0 %182
    %v185 = vmul.f32 %v179, %v183
    %187 = vrot.lane.b32.xlu0 %v180, 32
    %v188 = vpop.permute.xlu0 %187
    %v190 = vmul.f32 %v179, %v188
    %192 = vrot.lane.b32.xlu0 %v190, 32
    %v193 = vpop.permute.xlu0 %192
    %v195 = vadd.f32 %v185, %v193
    %v196 = vtanh.pop %v195
    %198 = vrot.lane.b32.xlu0 %v196, 32
    %v199 = vpop.permute.xlu0 %198
    %v201 = vmul.f32 %v179, %v199
    %s202 = scalar_lea.vmem [#allocation2], 8
    %v203 = vld [vmem:[%s202] sm:$0xff]
    %v204 = vpack.c.bf16 %v201, %v201
    %206 = vrot.lane.b32.xlu0 %v204, 64
    %v207 = vpop.permute.xlu0 %206
    %v209 = vsel %vm74, %v207, 0
    %211 = vmatpush.bf16.msra.mxu0 0
    %212 = vmatpush.bf16.msra.mxu0 0
    %213 = vmatpush.bf16.msra.mxu0 0
    %214 = vmatpush.bf16.msra.mxu0 0
    %215 = vmatpush.bf16.msra.mxu0 0
    %216 = vmatpush.bf16.msra.mxu0 0
    %217 = vmatpush.bf16.msra.mxu0 %v141
    %218 = vmatpush.bf16.msra.mxu0 %v140
    %219 = vmatmul.bf16.gmra.mxu0 %v209
    %v220 = vpop.f32.mrf.mxu0
    %v221 = vadd.f32 0.0, %v220
    %v222 = vpop.f32.mrf.mxu0
    %223 = vdwg.mxu0
    %v224 = vadd.f32 %v203, %v221
    %v225 = vxor.u32 %v224, 2147483648
    %v226 = vmul.f32 %v225, 1.442695
    %v227 = vpow.pop %v226
    %v228 = vadd.f32 %v227, 1.0
    %v229 = vrcp.pop %v228
    %v230 = vmul.f32 %v228, %v229
    %v231 = vsub.f32 1.0, %v230
    %v232 = vmul.f32 %v229, %v231
    %v233 = vadd.f32 %v229, %v232
    %vm234 = vweird.f32 %v228
    %vm235 = vweird.f32 %v229
    %vm236 = vmor %vm234, %vm235
    %v237 = vsel %vm236, %v229, %v233
    %v238 = vand.u32 2147483647, %v228
    %vm239 = vcmp.eq.f32.partialorder %v238, 8.507059e+37
    %v240 = vand.u32 %v228, 2147483648
    %v241 = vor.u32 1.1754944e-38, %v240
    %v242 = vsel %vm239, %v241, %v237
    %v243 = vmul.f32 1.0, %v242
    %v244 = vtanh.pop %v224
    %v245 = vmul.f32 %v243, %v195
    %247 = vrot.lane.b32.xlu0 %v244, 32
    %v248 = vpop.permute.xlu0 %247
    %v250 = vmul.f32 %v243, %v248
    %252 = vrot.lane.b32.xlu0 %v250, 32
    %v253 = vpop.permute.xlu0 %252
    %v255 = vadd.f32 %v245, %v253
    %v256 = vtanh.pop %v255
    %258 = vrot.lane.b32.xlu0 %v256, 32
    %v259 = vpop.permute.xlu0 %258
    %v261 = vmul.f32 %v243, %v259
    %s262 = scalar_lea.vmem [#allocation2], 16
    %v263 = vld [vmem:[%s262] sm:$0xff]
    %v264 = vpack.c.bf16 %v261, %v261
    %266 = vrot.lane.b32.xlu0 %v264, 64
    %v267 = vpop.permute.xlu0 %266
    %v269 = vsel %vm74, %v267, 0
    %271 = vmatpush.bf16.msra.mxu0 0
    %272 = vmatpush.bf16.msra.mxu0 0
    %273 = vmatpush.bf16.msra.mxu0 0
    %274 = vmatpush.bf16.msra.mxu0 0
    %275 = vmatpush.bf16.msra.mxu0 0
    %276 = vmatpush.bf16.msra.mxu0 0
    %277 = vmatpush.bf16.msra.mxu0 %v141
    %278 = vmatpush.bf16.msra.mxu0 %v140
    %279 = vmatmul.bf16.gmra.mxu0 %v269
    %v280 = vpop.f32.mrf.mxu0
    %v281 = vadd.f32 0.0, %v280
    %v282 = vpop.f32.mrf.mxu0
    %283 = vdwg.mxu0
    %v284 = vadd.f32 %v263, %v281
    %v285 = vxor.u32 %v284, 2147483648
    %v286 = vmul.f32 %v285, 1.442695
    %v287 = vpow.pop %v286
    %v288 = vadd.f32 %v287, 1.0
    %v289 = vrcp.pop %v288
    %v290 = vmul.f32 %v288, %v289
    %v291 = vsub.f32 1.0, %v290
    %v292 = vmul.f32 %v289, %v291
    %v293 = vadd.f32 %v289, %v292
    %vm294 = vweird.f32 %v288
    %vm295 = vweird.f32 %v289
    %vm296 = vmor %vm294, %vm295
    %v297 = vsel %vm296, %v289, %v293
    %v298 = vand.u32 2147483647, %v288
    %vm299 = vcmp.eq.f32.partialorder %v298, 8.507059e+37
    %v300 = vand.u32 %v288, 2147483648
    %v301 = vor.u32 1.1754944e-38, %v300
    %v302 = vsel %vm299, %v301, %v297
    %v303 = vmul.f32 1.0, %v302
    %v304 = vtanh.pop %v284
    %v305 = vmul.f32 %v303, %v255
    %307 = vrot.lane.b32.xlu0 %v304, 32
    %v308 = vpop.permute.xlu0 %307
    %v310 = vmul.f32 %v303, %v308
    %312 = vrot.lane.b32.xlu0 %v310, 32
    %v313 = vpop.permute.xlu0 %312
    %v315 = vadd.f32 %v305, %v313
    %v316 = vtanh.pop %v315
    %318 = vrot.lane.b32.xlu0 %v316, 32
    %v319 = vpop.permute.xlu0 %318
    %v321 = vmul.f32 %v303, %v319
    %s322 = scalar_lea.vmem [#allocation2], 24
    %v323 = vld [vmem:[%s322] sm:$0xff]
    %v324 = vpack.c.bf16 %v321, %v321
    %326 = vrot.lane.b32.xlu0 %v324, 64
    %v327 = vpop.permute.xlu0 %326
    %v329 = vsel %vm74, %v327, 0
    %331 = vmatpush.bf16.msra.mxu0 0
    %332 = vmatpush.bf16.msra.mxu0 0
    %333 = vmatpush.bf16.msra.mxu0 0
    %334 = vmatpush.bf16.msra.mxu0 0
    %335 = vmatpush.bf16.msra.mxu0 0
    %336 = vmatpush.bf16.msra.mxu0 0
    %337 = vmatpush.bf16.msra.mxu0 %v141
    %338 = vmatpush.bf16.msra.mxu0 %v140
    %339 = vmatmul.bf16.gmra.mxu0 %v329
    %v340 = vpop.f32.mrf.mxu0
    %v341 = vadd.f32 0.0, %v340
    %v342 = vpop.f32.mrf.mxu0
    %343 = vdwg.mxu0
    %v344 = vadd.f32 %v323, %v341
    %v345 = vxor.u32 %v344, 2147483648
    %v346 = vmul.f32 %v345, 1.442695
    %v347 = vpow.pop %v346
    %v348 = vadd.f32 %v347, 1.0
    %v349 = vrcp.pop %v348
    %v350 = vmul.f32 %v348, %v349
    %v351 = vsub.f32 1.0, %v350
    %v352 = vmul.f32 %v349, %v351
    %v353 = vadd.f32 %v349, %v352
    %vm354 = vweird.f32 %v348
    %vm355 = vweird.f32 %v349
    %vm356 = vmor %vm354, %vm355
    %v357 = vsel %vm356, %v349, %v353
    %v358 = vand.u32 2147483647, %v348
    %vm359 = vcmp.eq.f32.partialorder %v358, 8.507059e+37
    %v360 = vand.u32 %v348, 2147483648
    %v361 = vor.u32 1.1754944e-38, %v360
    %v362 = vsel %vm359, %v361, %v357
    %v363 = vmul.f32 1.0, %v362
    %v364 = vtanh.pop %v344
    %v365 = vmul.f32 %v363, %v315
    %367 = vrot.lane.b32.xlu0 %v364, 32
    %v368 = vpop.permute.xlu0 %367
    %v370 = vmul.f32 %v363, %v368
    %372 = vrot.lane.b32.xlu0 %v370, 32
    %v373 = vpop.permute.xlu0 %372
    %v375 = vadd.f32 %v365, %v373
    %v376 = vtanh.pop %v375
    %378 = vrot.lane.b32.xlu0 %v376, 32
    %v379 = vpop.permute.xlu0 %378
    %v381 = vmul.f32 %v363, %v379
    %s382 = scalar_lea.vmem [#allocation2], 32
    %v383 = vld [vmem:[%s382] sm:$0xff]
    %v384 = vpack.c.bf16 %v381, %v381
    %386 = vrot.lane.b32.xlu0 %v384, 64
    %v387 = vpop.permute.xlu0 %386
    %v389 = vsel %vm74, %v387, 0
    %391 = vmatpush.bf16.msra.mxu0 0
    %392 = vmatpush.bf16.msra.mxu0 0
    %393 = vmatpush.bf16.msra.mxu0 0
    %394 = vmatpush.bf16.msra.mxu0 0
    %395 = vmatpush.bf16.msra.mxu0 0
    %396 = vmatpush.bf16.msra.mxu0 0
    %397 = vmatpush.bf16.msra.mxu0 %v141
    %398 = vmatpush.bf16.msra.mxu0 %v140
    %399 = vmatmul.bf16.gmra.mxu0 %v389
    %v400 = vpop.f32.mrf.mxu0
    %v401 = vadd.f32 0.0, %v400
    %v402 = vpop.f32.mrf.mxu0
    %403 = vdwg.mxu0
    %v404 = vadd.f32 %v383, %v401
    %v405 = vxor.u32 %v404, 2147483648
    %v406 = vmul.f32 %v405, 1.442695
    %v407 = vpow.pop %v406
    %v408 = vadd.f32 %v407, 1.0
    %v409 = vrcp.pop %v408
    %v410 = vmul.f32 %v408, %v409
    %v411 = vsub.f32 1.0, %v410
    %v412 = vmul.f32 %v409, %v411
    %v413 = vadd.f32 %v409, %v412
    %vm414 = vweird.f32 %v408
    %vm415 = vweird.f32 %v409
    %vm416 = vmor %vm414, %vm415
    %v417 = vsel %vm416, %v409, %v413
    %v418 = vand.u32 2147483647, %v408
    %vm419 = vcmp.eq.f32.partialorder %v418, 8.507059e+37
    %v420 = vand.u32 %v408, 2147483648
    %v421 = vor.u32 1.1754944e-38, %v420
    %v422 = vsel %vm419, %v421, %v417
    %v423 = vmul.f32 1.0, %v422
    %v424 = vtanh.pop %v404
    %v425 = vmul.f32 %v423, %v375
    %427 = vrot.lane.b32.xlu0 %v424, 32
    %v428 = vpop.permute.xlu0 %427
    %v430 = vmul.f32 %v423, %v428
    %432 = vrot.lane.b32.xlu0 %v430, 32
    %v433 = vpop.permute.xlu0 %432
    %v435 = vadd.f32 %v425, %v433
    %v436 = vtanh.pop %v435
    %438 = vrot.lane.b32.xlu0 %v436, 32
    %v439 = vpop.permute.xlu0 %438
    %v441 = vmul.f32 %v423, %v439
    %s442 = scalar_lea.vmem [#allocation2], 40
    %v443 = vld [vmem:[%s442] sm:$0xff]
    %v444 = vpack.c.bf16 %v441, %v441
    %446 = vrot.lane.b32.xlu0 %v444, 64
    %v447 = vpop.permute.xlu0 %446
    %v449 = vsel %vm74, %v447, 0
    %451 = vmatpush.bf16.msra.mxu0 0
    %452 = vmatpush.bf16.msra.mxu0 0
    %453 = vmatpush.bf16.msra.mxu0 0
    %454 = vmatpush.bf16.msra.mxu0 0
    %455 = vmatpush.bf16.msra.mxu0 0
    %456 = vmatpush.bf16.msra.mxu0 0
    %457 = vmatpush.bf16.msra.mxu0 %v141
    %458 = vmatpush.bf16.msra.mxu0 %v140
    %459 = vmatmul.bf16.gmra.mxu0 %v449
    %v460 = vpop.f32.mrf.mxu0
    %v461 = vadd.f32 0.0, %v460
    %v462 = vpop.f32.mrf.mxu0
    %463 = vdwg.mxu0
    %v464 = vadd.f32 %v443, %v461
    %v465 = vxor.u32 %v464, 2147483648
    %v466 = vmul.f32 %v465, 1.442695
    %v467 = vpow.pop %v466
    %v468 = vadd.f32 %v467, 1.0
    %v469 = vrcp.pop %v468
    %v470 = vmul.f32 %v468, %v469
    %v471 = vsub.f32 1.0, %v470
    %v472 = vmul.f32 %v469, %v471
    %v473 = vadd.f32 %v469, %v472
    %vm474 = vweird.f32 %v468
    %vm475 = vweird.f32 %v469
    %vm476 = vmor %vm474, %vm475
    %v477 = vsel %vm476, %v469, %v473
    %v478 = vand.u32 2147483647, %v468
    %vm479 = vcmp.eq.f32.partialorder %v478, 8.507059e+37
    %v480 = vand.u32 %v468, 2147483648
    %v481 = vor.u32 1.1754944e-38, %v480
    %v482 = vsel %vm479, %v481, %v477
    %v483 = vmul.f32 1.0, %v482
    %v484 = vtanh.pop %v464
    %v485 = vmul.f32 %v483, %v435
    %487 = vrot.lane.b32.xlu0 %v484, 32
    %v488 = vpop.permute.xlu0 %487
    %v490 = vmul.f32 %v483, %v488
    %492 = vrot.lane.b32.xlu0 %v490, 32
    %v493 = vpop.permute.xlu0 %492
    %v495 = vadd.f32 %v485, %v493
    %v496 = vtanh.pop %v495
    %498 = vrot.lane.b32.xlu0 %v496, 32
    %v499 = vpop.permute.xlu0 %498
    %v501 = vmul.f32 %v483, %v499
    %s502 = scalar_lea.vmem [#allocation2], 48
    %v503 = vld [vmem:[%s502] sm:$0xff]
    %v504 = vpack.c.bf16 %v501, %v501
    %506 = vrot.lane.b32.xlu0 %v504, 64
    %v507 = vpop.permute.xlu0 %506
    %v509 = vsel %vm74, %v507, 0
    %511 = vmatpush.bf16.msra.mxu0 0
    %512 = vmatpush.bf16.msra.mxu0 0
    %513 = vmatpush.bf16.msra.mxu0 0
    %514 = vmatpush.bf16.msra.mxu0 0
    %515 = vmatpush.bf16.msra.mxu0 0
    %516 = vmatpush.bf16.msra.mxu0 0
    %517 = vmatpush.bf16.msra.mxu0 %v141
    %518 = vmatpush.bf16.msra.mxu0 %v140
    %519 = vmatmul.bf16.gmra.mxu0 %v509
    %v520 = vpop.f32.mrf.mxu0
    %v521 = vadd.f32 0.0, %v520
    %v522 = vpop.f32.mrf.mxu0
    %523 = vdwg.mxu0
    %v524 = vadd.f32 %v503, %v521
    %v525 = vxor.u32 %v524, 2147483648
    %v526 = vmul.f32 %v525, 1.442695
    %v527 = vpow.pop %v526
    %v528 = vadd.f32 %v527, 1.0
    %v529 = vrcp.pop %v528
    %v530 = vmul.f32 %v528, %v529
    %v531 = vsub.f32 1.0, %v530
    %v532 = vmul.f32 %v529, %v531
    %v533 = vadd.f32 %v529, %v532
    %vm534 = vweird.f32 %v528
    %vm535 = vweird.f32 %v529
    %vm536 = vmor %vm534, %vm535
    %v537 = vsel %vm536, %v529, %v533
    %v538 = vand.u32 2147483647, %v528
    %vm539 = vcmp.eq.f32.partialorder %v538, 8.507059e+37
    %v540 = vand.u32 %v528, 2147483648
    %v541 = vor.u32 1.1754944e-38, %v540
    %v542 = vsel %vm539, %v541, %v537
    %v543 = vmul.f32 1.0, %v542
    %v544 = vtanh.pop %v524
    %v545 = vmul.f32 %v543, %v495
    %547 = vrot.lane.b32.xlu0 %v544, 32
    %v548 = vpop.permute.xlu0 %547
    %v550 = vmul.f32 %v543, %v548
    %552 = vrot.lane.b32.xlu0 %v550, 32
    %v553 = vpop.permute.xlu0 %552
    %v555 = vadd.f32 %v545, %v553
    %v556 = vtanh.pop %v555
    %558 = vrot.lane.b32.xlu0 %v556, 32
    %v559 = vpop.permute.xlu0 %558
    %v561 = vmul.f32 %v543, %v559
    %s562 = scalar_lea.vmem [#allocation2], 56
    %v563 = vld [vmem:[%s562] sm:$0xff]
    %v564 = vpack.c.bf16 %v561, %v561
    %566 = vrot.lane.b32.xlu0 %v564, 64
    %v567 = vpop.permute.xlu0 %566
    %v569 = vsel %vm74, %v567, 0
    %571 = vmatpush.bf16.msra.mxu0 0
    %572 = vmatpush.bf16.msra.mxu0 0
    %573 = vmatpush.bf16.msra.mxu0 0
    %574 = vmatpush.bf16.msra.mxu0 0
    %575 = vmatpush.bf16.msra.mxu0 0
    %576 = vmatpush.bf16.msra.mxu0 0
    %577 = vmatpush.bf16.msra.mxu0 %v141
    %578 = vmatpush.bf16.msra.mxu0 %v140
    %579 = vmatmul.bf16.gmra.mxu0 %v569
    %v580 = vpop.f32.mrf.mxu0
    %v581 = vadd.f32 0.0, %v580
    %v582 = vpop.f32.mrf.mxu0
    %583 = vdwg.mxu0
    %v584 = vadd.f32 %v563, %v581
    %v585 = vxor.u32 %v584, 2147483648
    %v586 = vmul.f32 %v585, 1.442695
    %v587 = vpow.pop %v586
    %v588 = vadd.f32 %v587, 1.0
    %v589 = vrcp.pop %v588
    %v590 = vmul.f32 %v588, %v589
    %v591 = vsub.f32 1.0, %v590
    %v592 = vmul.f32 %v589, %v591
    %v593 = vadd.f32 %v589, %v592
    %vm594 = vweird.f32 %v588
    %vm595 = vweird.f32 %v589
    %vm596 = vmor %vm594, %vm595
    %v597 = vsel %vm596, %v589, %v593
    %v598 = vand.u32 2147483647, %v588
    %vm599 = vcmp.eq.f32.partialorder %v598, 8.507059e+37
    %v600 = vand.u32 %v588, 2147483648
    %v601 = vor.u32 1.1754944e-38, %v600
    %v602 = vsel %vm599, %v601, %v597
    %v603 = vmul.f32 1.0, %v602
    %v604 = vtanh.pop %v584
    %v605 = vmul.f32 %v603, %v555
    %607 = vrot.lane.b32.xlu0 %v604, 32
    %v608 = vpop.permute.xlu0 %607
    %v610 = vmul.f32 %v603, %v608
    %612 = vrot.lane.b32.xlu0 %v610, 32
    %v613 = vpop.permute.xlu0 %612
    %v615 = vadd.f32 %v605, %v613
    %v616 = vtanh.pop %v615
    %618 = vrot.lane.b32.xlu0 %v616, 32
    %v619 = vpop.permute.xlu0 %618
    %v621 = vmul.f32 %v603, %v619
    %623 = vrot.lane.b32.xlu0 %v621, 64
    %v624 = vpop.permute.xlu0 %623
    %626 = vst.msk [vmem:[#allocation3] sm:$0xff] %vm74, %v624
    %628 = vrot.lane.b32.xlu0 %v615, 96
    %v629 = vpop.permute.xlu0 %628
    %631 = vst.msk [vmem:[#allocation4] sm:$0xff] %vm74, %v629
    // Predicated region
    $region22: #{tpu_custom_call.1} parent=1 // pred_check
      %p632 = pneg %p19
    $region23: #{tpu_custom_call.1} parent=1 // pred_check_branch
      %634 = sbr.rel (%p632) target = $region25
    $region24: #{tpu_custom_call.1} parent=1 // pred_region
      %635 = vst.msk [vmem:[#allocation5] sm:$0xff] %vm74, %v624
    $region25: #{tpu_custom_call.1} parent=1 // pred_fallthru
      _
    // Predicated region
    $region26: #{tpu_custom_call.1} parent=1 // pred_check
      _
    $region27: #{tpu_custom_call.1} parent=1 // pred_check_branch
      %637 = sbr.rel (0) target = $region29
    $region28: #{tpu_custom_call.1} parent=1 // pred_region
      %639 = vsyncadd [#allocation6], 0
      %s641 = sshll.u32 [#allocation5], 4
      %s642 = int_to_ptr.vmem [resolvable:$true] %s641
      %s643 = sshll.u32 %s4, 4
      %s644 = int_to_ptr.hbm [resolvable:$true] %s643
      %646 = dma.vmem_to_hbm [thread:$0]  %s642, 128, %s644, [#allocation6]
    $region29: #{tpu_custom_call.1} parent=1 // pred_fallthru
      _
    // Predicated region
    $region30: #{tpu_custom_call.1} parent=1 // pred_check
      _
    $region31: #{tpu_custom_call.1} parent=1 // pred_check_branch
      %648 = sbr.rel (0) target = $region33
    $region32: #{tpu_custom_call.1} parent=1 // pred_region
      %650 = dma.done [#allocation6], 128
    $region33: #{tpu_custom_call.1} parent=1 // pred_fallthru
      _
    %651 = vsyncpa [#allocation6], 1

</llo_original>
